<compile_context>
chip_gen: v6e
topology: v6e:2x2x1
jax: 0.10.0
libtpu: 0.0.40
codegen_flags: <defaults>
</compile_context>

<pallas_src>
import functools

import jax
import jax.numpy as jnp
from jax.experimental import pallas as pl
from jax.experimental.pallas import tpu as pltpu


def _dpcnn_block_kernel(x_ref, w1_ref, b1_ref, w2_ref, b2_ref, rii_ref, se_ref, so_ref,
                        o_ref, *, seq_len, ktaps):
    x = x_ref[...]                                   # (Bt*L, C) f32, channels-last
    rows, _ = x.shape
    L = seq_len
    K = ktaps
    p = (K - 1) // 2
    row_in_item = rii_ref[...]                       # (Bt*L, 1) int32, position within item

    def conv(v, w_ref, b_ref):
        # v: (rows, C), already ReLU'ed.  Torch zero-pads the conv input (the ReLU
        # output), so zeroing the boundary taps here is exact.  Build the im2col slab
        # by rolling along sublanes (XLU) and masking rows that would read across the
        # zero padding / item boundary, then do one deep MXU matmul.
        cols = []
        for k in range(K):
            s = p - k                                # col_k[i] = v[i + k - p] = v[i - s]
            if s == 0:
                vk = v
            else:
                vk = pltpu.roll(v, shift=s % rows, axis=0)
                if s > 0:
                    vk = jnp.where(row_in_item < s, 0.0, vk)
                else:
                    vk = jnp.where(row_in_item >= L + s, 0.0, vk)
            cols.append(vk)
        im2col = jnp.concatenate(cols, axis=-1)      # (rows, K*C)
        w = w_ref[...]                               # (K*C, C), f32 or bf16
        acc = jnp.dot(im2col.astype(w.dtype), w, preferred_element_type=jnp.float32)
        return acc + b_ref[...]                      # bias (1, C) broadcast, f32

    h = conv(jnp.maximum(x, 0.0), w1_ref, b1_ref)    # ReLU -> Conv1d
    h = conv(jnp.maximum(h, 0.0), w2_ref, b2_ref)    # ReLU -> Conv1d
    out = x + h                                      # residual add (un-ReLU'd x), f32

    # MaxPool1d(kernel=2, stride=2): precomputed 0/1 selection matrices gather even/odd
    # rows (one MXU push each) -> elementwise max.  Exact in f32.
    pooled = jnp.maximum(
        jnp.dot(se_ref[...], out, preferred_element_type=jnp.float32),
        jnp.dot(so_ref[...], out, preferred_element_type=jnp.float32))
    o_ref[...] = pooled.astype(o_ref.dtype)


def dpcnn_residual_block_downsample(x_ncw, w1, b1, w2, b2, *, padding=None,
                                     matmul_dtype=jnp.float32, batch_tile=None):
    """Forward of DPCNNResidualBlockDownSample.

    x_ncw: (B, C, L) float32  (torch Conv1d NCW layout)
    w*:    (C, C, K) float32  (torch Conv1d weight; module must use padding=(K-1)//2)
    b*:    (C,) float32
    returns (B, C, L // 2) float32
    """
    B, C, L = x_ncw.shape
    K = w1.shape[-1]
    if padding is None:
        padding = (K - 1) // 2
    assert K % 2 == 1 and padding == (K - 1) // 2, "kernel assumes 'same' conv (odd K)"
    assert L % 2 == 0, "MaxPool1d(2) path assumes even sequence length"
    # TODO(synk): odd-L pooling (floor) and padding != (K-1)//2 are not implemented.
    Lp = L // 2

    # Rows per grid step: aim for ~128 MXU rows while keeping Bt | B; larger batches
    # then still give >=2 grid steps so v7x's two TensorCores both get work.
    if batch_tile is None:
        target = max(1, 128 // L)
        if B <= target:
            batch_tile = B
        else:
            batch_tile = max(d for d in range(1, target + 1) if B % d == 0)
    Bt = batch_tile
    assert B % Bt == 0
    nsteps = B // Bt
    if nsteps > 1 and (Bt * Lp) % 8 != 0:            # keep block sublane dims 8-aligned
        Bt, nsteps = B, 1

    # channels-last, batch rows flattened into one lane-dense slab
    x_flat = jnp.transpose(x_ncw, (0, 2, 1)).reshape(B * L, C)

    def flat(w):                                     # (Cout, Cin, K) -> (K*Cin, Cout)
        return jnp.transpose(w, (2, 1, 0)).reshape(K * C, C).astype(matmul_dtype)

    # Precomputed helpers (identical for every grid step -> constant index_map, fetched
    # once and kept VMEM-resident by the pipeline).
    row_in_item = (jnp.arange(Bt * L, dtype=jnp.int32) % L).reshape(Bt * L, 1)
    r = jnp.arange(Bt * Lp)
    c = jnp.arange(Bt * L)
    sel_even = (c[None, :] == 2 * r[:, None]).astype(jnp.float32)
    sel_odd = (c[None, :] == 2 * r[:, None] + 1).astype(jnp.float32)

    kernel = functools.partial(_dpcnn_block_kernel, seq_len=L, ktaps=K)

    out_flat = pl.pallas_call(
        kernel,
        out_shape=jax.ShapeDtypeStruct((B * Lp, C), jnp.float32),
        grid=(nsteps,),
        in_specs=[
            pl.BlockSpec((Bt * L, C), lambda i: (i, 0)),        # x slab (Bt rows fused)
            pl.BlockSpec((K * C, C), lambda i: (0, 0)),         # w1 slab (resident)
            pl.BlockSpec((1, C), lambda i: (0, 0)),             # b1
            pl.BlockSpec((K * C, C), lambda i: (0, 0)),         # w2 slab (resident)
            pl.BlockSpec((1, C), lambda i: (0, 0)),             # b2
            pl.BlockSpec((Bt * L, 1), lambda i: (0, 0)),        # row-in-item index
            pl.BlockSpec((Bt * Lp, Bt * L), lambda i: (0, 0)),  # pool even-row selector
            pl.BlockSpec((Bt * Lp, Bt * L), lambda i: (0, 0)),  # pool odd-row selector
        ],
        out_specs=pl.BlockSpec((Bt * Lp, C), lambda i: (i, 0)),
        compiler_params=pltpu.CompilerParams(
            dimension_semantics=("parallel",)),                 # batch slabs independent
    )(x_flat, flat(w1), b1.reshape(1, C).astype(jnp.float32),
      flat(w2), b2.reshape(1, C).astype(jnp.float32),
      row_in_item, sel_even, sel_odd)

    return jnp.transpose(out_flat.reshape(B, Lp, C), (0, 2, 1))


# --------------------------------------------------------------------------- reference

def _ref_forward(x, w1, b1, w2, b2, padding):
    def conv(v, w, b):
        return jax.lax.conv_general_dilated(
            v, w, window_strides=(1,), padding=[(padding, padding)],
            dimension_numbers=("NCW", "OIW", "NCW")) + b[None, :, None]

    r = conv(jax.nn.relu(x), w1, b1)
    r = conv(jax.nn.relu(r), w2, b2)
    out = x + r
    B, C, L = out.shape
    Lp = L // 2
    return out[..., :2 * Lp].reshape(B, C, Lp, 2).max(axis=-1)   # MaxPool1d(2)


# --------------------------------------------------------------------------- main

if __name__ == "__main__":
    B, C, L = 2, 32, 16          # batch=2, channels=32, sequence length=16
    K, padding = 3, 1            # kernel_size=3, padding=1 ('same')

    key = jax.random.PRNGKey(0)
    kx, k1, k2, k3, k4 = jax.random.split(key, 5)
    x = jax.random.normal(kx, (B, C, L), jnp.float32)
    w1 = 0.1 * jax.random.normal(k1, (C, C, K), jnp.float32)
    b1 = 0.1 * jax.random.normal(k2, (C,), jnp.float32)
    w2 = 0.1 * jax.random.normal(k3, (C, C, K), jnp.float32)
    b2 = 0.1 * jax.random.normal(k4, (C,), jnp.float32)

    ref = jax.block_until_ready(_ref_forward(x, w1, b1, w2, b2, padding))

    # f32 path (exact on all generations)
    out = jax.block_until_ready(
        dpcnn_residual_block_downsample(x, w1, b1, w2, b2, padding=padding))
    assert out.shape == (B, C, L // 2), (out.shape, (B, C, L // 2))
    assert jnp.allclose(out, ref, rtol=1e-4, atol=1e-4), float(jnp.max(jnp.abs(out - ref)))

    # bf16 MXU path (v6e/v7x recommendation): f32 accumulation, looser tolerance.
    out_bf16 = jax.block_until_ready(
        dpcnn_residual_block_downsample(x, w1, b1, w2, b2, padding=padding,
                                        matmul_dtype=jnp.bfloat16))
    assert out_bf16.shape == (B, C, L // 2)
    assert jnp.allclose(out_bf16, ref, rtol=1e-1, atol=1e-1), \
        float(jnp.max(jnp.abs(out_bf16 - ref)))

    print("KERNEL_OK")
</pallas_src>

<mosaic_0001>
module attributes {stable_mosaic.version = 11 : i64} {
  func.func @_dpcnn_block_kernel(%arg0: i32, %arg1: memref<32x32xf32, #tpu.memory_space<vmem>>, %arg2: memref<96x32xf32, #tpu.memory_space<vmem>>, %arg3: memref<1x32xf32, #tpu.memory_space<vmem>>, %arg4: memref<96x32xf32, #tpu.memory_space<vmem>>, %arg5: memref<1x32xf32, #tpu.memory_space<vmem>>, %arg6: memref<32x1xi32, #tpu.memory_space<vmem>>, %arg7: memref<16x32xf32, #tpu.memory_space<vmem>>, %arg8: memref<16x32xf32, #tpu.memory_space<vmem>>, %arg9: memref<16x32xf32, #tpu.memory_space<vmem>>) attributes {dimension_semantics = [#tpu.dimension_semantics<parallel>], iteration_bounds = array<i64: 1>, scalar_prefetch = 0 : i64, scratch_operands = 0 : i64, tpu.core_type = #tpu.core_type<tc>, window_params = [{transform_indices = @transform_0, window_bounds = array<i64: 32, 32>}, {pipeline_mode = #tpu.pipeline_mode<synchronous>, transform_indices = @transform_1, window_bounds = array<i64: 96, 32>}, {pipeline_mode = #tpu.pipeline_mode<synchronous>, transform_indices = @transform_2, window_bounds = array<i64: 1, 32>}, {pipeline_mode = #tpu.pipeline_mode<synchronous>, transform_indices = @transform_3, window_bounds = array<i64: 96, 32>}, {pipeline_mode = #tpu.pipeline_mode<synchronous>, transform_indices = @transform_4, window_bounds = array<i64: 1, 32>}, {pipeline_mode = #tpu.pipeline_mode<synchronous>, transform_indices = @transform_5, window_bounds = array<i64: 32, 1>}, {pipeline_mode = #tpu.pipeline_mode<synchronous>, transform_indices = @transform_6, window_bounds = array<i64: 16, 32>}, {pipeline_mode = #tpu.pipeline_mode<synchronous>, transform_indices = @transform_7, window_bounds = array<i64: 16, 32>}, {transform_indices = @transform_8, window_bounds = array<i64: 16, 32>}]} {
    %c0 = arith.constant 0 : index
    %c0_0 = arith.constant 0 : index
    %0 = vector.load %arg1[%c0, %c0_0] : memref<32x32xf32, #tpu.memory_space<vmem>>, vector<32x32xf32>
    %c0_1 = arith.constant 0 : index
    %c0_2 = arith.constant 0 : index
    %1 = vector.load %arg6[%c0_1, %c0_2] : memref<32x1xi32, #tpu.memory_space<vmem>>, vector<32x1xi32>
    %cst = arith.constant 0.000000e+00 : f32
    %2 = vector.broadcast %cst : f32 to vector<32x32xf32>
    %3 = arith.maximumf %0, %2 : vector<32x32xf32>
    %c1_i32 = arith.constant 1 : i32
    %4 = tpu.dynamic_rotate %3 by %c1_i32 dim 0 : vector<32x32xf32>, i32 -> vector<32x32xf32>
    %c1_i32_3 = arith.constant 1 : i32
    %5 = vector.broadcast %c1_i32_3 : i32 to vector<32x1xi32>
    %6 = arith.cmpi slt, %1, %5 : vector<32x1xi32>
    %cst_4 = arith.constant 0.000000e+00 : f32
    %7 = vector.shape_cast %6 : vector<32x1xi1> to vector<32x1xi1>
    %8 = vector.broadcast %7 : vector<32x1xi1> to vector<32x32xi1>
    %9 = vector.broadcast %cst_4 : f32 to vector<32x32xf32>
    %10 = arith.select %8, %9, %4 : vector<32x32xi1>, vector<32x32xf32>
    %c31_i32 = arith.constant 31 : i32
    %11 = tpu.dynamic_rotate %3 by %c31_i32 dim 0 : vector<32x32xf32>, i32 -> vector<32x32xf32>
    %c15_i32 = arith.constant 15 : i32
    %12 = vector.broadcast %c15_i32 : i32 to vector<32x1xi32>
    %13 = arith.cmpi sge, %1, %12 : vector<32x1xi32>
    %cst_5 = arith.constant 0.000000e+00 : f32
    %14 = vector.shape_cast %13 : vector<32x1xi1> to vector<32x1xi1>
    %15 = vector.broadcast %14 : vector<32x1xi1> to vector<32x32xi1>
    %16 = vector.broadcast %cst_5 : f32 to vector<32x32xf32>
    %17 = arith.select %15, %16, %11 : vector<32x32xi1>, vector<32x32xf32>
    %18 = tpu.concatenate %10, %3, %17 in 1 : vector<32x32xf32>, vector<32x32xf32>, vector<32x32xf32> -> vector<32x96xf32>
    %c0_6 = arith.constant 0 : index
    %c0_7 = arith.constant 0 : index
    %19 = vector.load %arg2[%c0_6, %c0_7] : memref<96x32xf32, #tpu.memory_space<vmem>>, vector<96x32xf32>
    %cst_8 = arith.constant dense<0.000000e+00> : vector<32x32xf32>
    %20 = tpu.matmul %18, %19, %cst_8 {dimension_numbers = #tpu.dot_dimension_numbers<[1], [0], [0], [1], [0, 0, 1, 1], [], []>} : vector<32x96xf32>, vector<96x32xf32>, vector<32x32xf32> -> vector<32x32xf32>
    %c0_9 = arith.constant 0 : index
    %c0_10 = arith.constant 0 : index
    %21 = vector.load %arg3[%c0_9, %c0_10] : memref<1x32xf32, #tpu.memory_space<vmem>>, vector<1x32xf32>
    %22 = vector.broadcast %21 : vector<1x32xf32> to vector<32x32xf32>
    %23 = arith.addf %20, %22 : vector<32x32xf32>
    %cst_11 = arith.constant 0.000000e+00 : f32
    %24 = vector.broadcast %cst_11 : f32 to vector<32x32xf32>
    %25 = arith.maximumf %23, %24 : vector<32x32xf32>
    %c1_i32_12 = arith.constant 1 : i32
    %26 = tpu.dynamic_rotate %25 by %c1_i32_12 dim 0 : vector<32x32xf32>, i32 -> vector<32x32xf32>
    %c1_i32_13 = arith.constant 1 : i32
    %27 = vector.broadcast %c1_i32_13 : i32 to vector<32x1xi32>
    %28 = arith.cmpi slt, %1, %27 : vector<32x1xi32>
    %cst_14 = arith.constant 0.000000e+00 : f32
    %29 = vector.shape_cast %28 : vector<32x1xi1> to vector<32x1xi1>
    %30 = vector.broadcast %29 : vector<32x1xi1> to vector<32x32xi1>
    %31 = vector.broadcast %cst_14 : f32 to vector<32x32xf32>
    %32 = arith.select %30, %31, %26 : vector<32x32xi1>, vector<32x32xf32>
    %c31_i32_15 = arith.constant 31 : i32
    %33 = tpu.dynamic_rotate %25 by %c31_i32_15 dim 0 : vector<32x32xf32>, i32 -> vector<32x32xf32>
    %c15_i32_16 = arith.constant 15 : i32
    %34 = vector.broadcast %c15_i32_16 : i32 to vector<32x1xi32>
    %35 = arith.cmpi sge, %1, %34 : vector<32x1xi32>
    %cst_17 = arith.constant 0.000000e+00 : f32
    %36 = vector.shape_cast %35 : vector<32x1xi1> to vector<32x1xi1>
    %37 = vector.broadcast %36 : vector<32x1xi1> to vector<32x32xi1>
    %38 = vector.broadcast %cst_17 : f32 to vector<32x32xf32>
    %39 = arith.select %37, %38, %33 : vector<32x32xi1>, vector<32x32xf32>
    %40 = tpu.concatenate %32, %25, %39 in 1 : vector<32x32xf32>, vector<32x32xf32>, vector<32x32xf32> -> vector<32x96xf32>
    %c0_18 = arith.constant 0 : index
    %c0_19 = arith.constant 0 : index
    %41 = vector.load %arg4[%c0_18, %c0_19] : memref<96x32xf32, #tpu.memory_space<vmem>>, vector<96x32xf32>
    %cst_20 = arith.constant dense<0.000000e+00> : vector<32x32xf32>
    %42 = tpu.matmul %40, %41, %cst_20 {dimension_numbers = #tpu.dot_dimension_numbers<[1], [0], [0], [1], [0, 0, 1, 1], [], []>} : vector<32x96xf32>, vector<96x32xf32>, vector<32x32xf32> -> vector<32x32xf32>
    %c0_21 = arith.constant 0 : index
    %c0_22 = arith.constant 0 : index
    %43 = vector.load %arg5[%c0_21, %c0_22] : memref<1x32xf32, #tpu.memory_space<vmem>>, vector<1x32xf32>
    %44 = vector.broadcast %43 : vector<1x32xf32> to vector<32x32xf32>
    %45 = arith.addf %42, %44 : vector<32x32xf32>
    %46 = arith.addf %0, %45 : vector<32x32xf32>
    %c0_23 = arith.constant 0 : index
    %c0_24 = arith.constant 0 : index
    %47 = vector.load %arg7[%c0_23, %c0_24] : memref<16x32xf32, #tpu.memory_space<vmem>>, vector<16x32xf32>
    %cst_25 = arith.constant dense<0.000000e+00> : vector<16x32xf32>
    %48 = tpu.matmul %47, %46, %cst_25 {dimension_numbers = #tpu.dot_dimension_numbers<[1], [0], [0], [1], [0, 0, 1, 1], [], []>} : vector<16x32xf32>, vector<32x32xf32>, vector<16x32xf32> -> vector<16x32xf32>
    %c0_26 = arith.constant 0 : index
    %c0_27 = arith.constant 0 : index
    %49 = vector.load %arg8[%c0_26, %c0_27] : memref<16x32xf32, #tpu.memory_space<vmem>>, vector<16x32xf32>
    %cst_28 = arith.constant dense<0.000000e+00> : vector<16x32xf32>
    %50 = tpu.matmul %49, %46, %cst_28 {dimension_numbers = #tpu.dot_dimension_numbers<[1], [0], [0], [1], [0, 0, 1, 1], [], []>} : vector<16x32xf32>, vector<32x32xf32>, vector<16x32xf32> -> vector<16x32xf32>
    %51 = arith.maximumf %48, %50 : vector<16x32xf32>
    %c0_29 = arith.constant 0 : index
    %c0_30 = arith.constant 0 : index
    %52 = vector.load %arg9[%c0_29, %c0_30] : memref<16x32xf32, #tpu.memory_space<vmem>>, vector<16x32xf32>
    tpu.vector_store %arg9[%c0_29, %c0_30], %51 {strides = array<i32>} : memref<16x32xf32, #tpu.memory_space<vmem>>, vector<16x32xf32>,
    return
  }
  func.func @transform_0(%arg0: i32) -> (i32, i32) {
    %c0_i32 = arith.constant 0 : i32
    %c0_i32_0 = arith.constant 0 : i32
    return %arg0, %c0_i32 : i32, i32
  }
  func.func @transform_1(%arg0: i32) -> (i32, i32) {
    %c0_i32 = arith.constant 0 : i32
    %c0_i32_0 = arith.constant 0 : i32
    %c0_i32_1 = arith.constant 0 : i32
    return %c0_i32, %c0_i32_0 : i32, i32
  }
  func.func @transform_2(%arg0: i32) -> (i32, i32) {
    %c0_i32 = arith.constant 0 : i32
    %c0_i32_0 = arith.constant 0 : i32
    %c0_i32_1 = arith.constant 0 : i32
    return %c0_i32, %c0_i32_0 : i32, i32
  }
  func.func @transform_3(%arg0: i32) -> (i32, i32) {
    %c0_i32 = arith.constant 0 : i32
    %c0_i32_0 = arith.constant 0 : i32
    %c0_i32_1 = arith.constant 0 : i32
    return %c0_i32, %c0_i32_0 : i32, i32
  }
  func.func @transform_4(%arg0: i32) -> (i32, i32) {
    %c0_i32 = arith.constant 0 : i32
    %c0_i32_0 = arith.constant 0 : i32
    %c0_i32_1 = arith.constant 0 : i32
    return %c0_i32, %c0_i32_0 : i32, i32
  }
  func.func @transform_5(%arg0: i32) -> (i32, i32) {
    %c0_i32 = arith.constant 0 : i32
    %c0_i32_0 = arith.constant 0 : i32
    %c0_i32_1 = arith.constant 0 : i32
    return %c0_i32, %c0_i32_0 : i32, i32
  }
  func.func @transform_6(%arg0: i32) -> (i32, i32) {
    %c0_i32 = arith.constant 0 : i32
    %c0_i32_0 = arith.constant 0 : i32
    %c0_i32_1 = arith.constant 0 : i32
    return %c0_i32, %c0_i32_0 : i32, i32
  }
  func.func @transform_7(%arg0: i32) -> (i32, i32) {
    %c0_i32 = arith.constant 0 : i32
    %c0_i32_0 = arith.constant 0 : i32
    %c0_i32_1 = arith.constant 0 : i32
    return %c0_i32, %c0_i32_0 : i32, i32
  }
  func.func @transform_8(%arg0: i32) -> (i32, i32) {
    %c0_i32 = arith.constant 0 : i32
    %c0_i32_0 = arith.constant 0 : i32
    return %arg0, %c0_i32 : i32, i32
  }
}

</mosaic_0001>

<llo_original>
// kernel: tpu_custom_call.1
$region0: #{tpu_custom_call.1}
  #allocation0 [shape = 'u32[]', space=smem, size = 0x4, offset = 0x4, fixed_abs, tag = 'smem constant byte address 0x4 - core index']
  #allocation1 [shape = 'u32[144,128]{1,0:T(1,128)}', space=vmem, size = 0x12000, scoped, tag = 'internal scratch']
  %s0 = inlined_call_operand.vmem [shape: f32[32,32], index: 0, kind: input, shape index: {}]
  %s1 = inlined_call_operand.vmem [shape: f32[96,32], index: 1, kind: input, shape index: {}]
  %s2 = inlined_call_operand.vmem [shape: f32[1,32], index: 2, kind: input, shape index: {}]
  %s3 = inlined_call_operand.vmem [shape: f32[96,32], index: 3, kind: input, shape index: {}]
  %s4 = inlined_call_operand.vmem [shape: f32[1,32], index: 4, kind: input, shape index: {}]
  %s5 = inlined_call_operand.vmem [shape: s32[32,1], index: 5, kind: input, shape index: {}]
  %s6 = inlined_call_operand.vmem [shape: f32[16,32], index: 6, kind: input, shape index: {}]
  %s7 = inlined_call_operand.vmem [shape: f32[16,32], index: 7, kind: input, shape index: {}]
  %s8 = inlined_call_operand.hbm [shape: f32[16,32], index: 8, kind: output, shape index: {}]
  %s9 = sld [smem:[#allocation0]]
  $region42: #{tpu_custom_call.1} parent=0
    _
  %s11 = ssub.s32 1, %s9
  %s12 = scalar_select 0, %s11, %s9
  $region1: #{tpu_custom_call.1} parent=0
    #allocation2 [shape = 'u8[8192]{0}', space=vmem, size = 0x2000, scoped, tag = 'output window, operand 0, single buffered']
    #allocation3 [shape = 's32[1]{0}', space=sflag, size = 0x4, scoped, tag = 'scoped memory for tpu_custom_call.1']
    %13 = vsyncpa [#allocation3], 0
    // Predicated region
    $region2: #{tpu_custom_call.1} parent=1 // pred_check
      _
    $region3: #{tpu_custom_call.1} parent=1 // pred_check_branch
      %15 = sbr.rel (0) target = $region5
    $region4: #{tpu_custom_call.1} parent=1 // pred_region
      _
    $region5: #{tpu_custom_call.1} parent=1 // pred_fallthru
      _
    // Predicated region
    $region6: #{tpu_custom_call.1} parent=1 // pred_check
      _
    $region7: #{tpu_custom_call.1} parent=1 // pred_check_branch
      %17 = sbr.rel (0) target = $region9
    $region8: #{tpu_custom_call.1} parent=1 // pred_region
      _
    $region9: #{tpu_custom_call.1} parent=1 // pred_fallthru
      _
    // Predicated region
    $region10: #{tpu_custom_call.1} parent=1 // pred_check
      _
    $region11: #{tpu_custom_call.1} parent=1 // pred_check_branch
      %19 = sbr.rel (0) target = $region13
    $region12: #{tpu_custom_call.1} parent=1 // pred_region
      _
    $region13: #{tpu_custom_call.1} parent=1 // pred_fallthru
      _
    // Predicated region
    $region14: #{tpu_custom_call.1} parent=1 // pred_check
      _
    $region15: #{tpu_custom_call.1} parent=1 // pred_check_branch
      %21 = sbr.rel (0) target = $region17
    $region16: #{tpu_custom_call.1} parent=1 // pred_region
      _
    $region17: #{tpu_custom_call.1} parent=1 // pred_fallthru
      _
    // Predicated region
    $region18: #{tpu_custom_call.1} parent=1 // pred_check
      _
    $region19: #{tpu_custom_call.1} parent=1 // pred_check_branch
      %23 = sbr.rel (0) target = $region21
    $region20: #{tpu_custom_call.1} parent=1 // pred_region
      _
    $region21: #{tpu_custom_call.1} parent=1 // pred_fallthru
      _
    // Predicated region
    $region22: #{tpu_custom_call.1} parent=1 // pred_check
      _
    $region23: #{tpu_custom_call.1} parent=1 // pred_check_branch
      %25 = sbr.rel (0) target = $region25
    $region24: #{tpu_custom_call.1} parent=1 // pred_region
      _
    $region25: #{tpu_custom_call.1} parent=1 // pred_fallthru
      _
    // Predicated region
    $region26: #{tpu_custom_call.1} parent=1 // pred_check
      _
    $region27: #{tpu_custom_call.1} parent=1 // pred_check_branch
      %27 = sbr.rel (0) target = $region29
    $region28: #{tpu_custom_call.1} parent=1 // pred_region
      _
    $region29: #{tpu_custom_call.1} parent=1 // pred_fallthru
      _
    // Predicated region
    $region30: #{tpu_custom_call.1} parent=1 // pred_check
      _
    $region31: #{tpu_custom_call.1} parent=1 // pred_check_branch
      %29 = sbr.rel (0) target = $region33
    $region32: #{tpu_custom_call.1} parent=1 // pred_region
      _
    $region33: #{tpu_custom_call.1} parent=1 // pred_fallthru
      _
    %v30 = vld [vmem:[%s0] sm:$0xff]
    %v31 = vld [vmem:[%s0 + $0x8] sm:$0xff]
    %v32 = vld [vmem:[%s0 + $0x10] sm:$0xff]
    %v33 = vld [vmem:[%s0 + $0x18] sm:$0xff]
    %v34 = vld [vmem:[%s5] sm:$0xff]
    %v35 = vld [vmem:[%s5 + $0x8] sm:$0xff]
    %v36 = vld [vmem:[%s5 + $0x10] sm:$0xff]
    %v37 = vld [vmem:[%s5 + $0x18] sm:$0xff]
    %v38 = vmax.f32 %v30, 0.0
    %v39 = vmax.f32 %v31, 0.0
    %v40 = vmax.f32 %v32, 0.0
    %v41 = vmax.f32 %v33, 0.0
    %v42 = vrot.slane %v38, 7
    %v43 = vrot.slane %v39, 7
    %v44 = vrot.slane %v40, 7
    %v45 = vrot.slane %v41, 7
    %v46 = vlaneseq
    %v47 = vshrl.u32 %v46, 7
    %vm48 = vcmp.lt.s32.totalorder %v47, 1
    %v49 = vsel %vm48, %v44, %v45
    %v50 = vsel %vm48, %v43, %v44
    %v51 = vsel %vm48, %v42, %v43
    %v52 = vsel %vm48, %v45, %v42
    %vm53 = vcmp.lt.s32.totalorder %v34, 1
    %vm54 = vcmp.lt.s32.totalorder %v35, 1
    %vm55 = vcmp.lt.s32.totalorder %v36, 1
    %vm56 = vcmp.lt.s32.totalorder %v37, 1
    %v57 = vsel %vm53, 1, 0
    %v58 = vsel %vm54, 1, 0
    %v59 = vsel %vm55, 1, 0
    %v60 = vsel %vm56, 1, 0
    %61 = vset.pattern.permute.xlu0 0
    %62 = vperm.xlu0 %61, %v57
    %v63 = vpop.permute.xlu0 %62
    %64 = vset.pattern.permute.xlu0 0
    %65 = vperm.xlu0 %64, %v58
    %v66 = vpop.permute.xlu0 %65
    %67 = vset.pattern.permute.xlu0 0
    %68 = vperm.xlu0 %67, %v59
    %v69 = vpop.permute.xlu0 %68
    %70 = vset.pattern.permute.xlu0 0
    %71 = vperm.xlu0 %70, %v60
    %v72 = vpop.permute.xlu0 %71
    %vm73 = vcmp.eq.s32.totalorder %v63, 1
    %vm74 = vcmp.eq.s32.totalorder %v66, 1
    %vm75 = vcmp.eq.s32.totalorder %v69, 1
    %vm76 = vcmp.eq.s32.totalorder %v72, 1
    %v77 = vsel %vm73, 0.0, %v52
    %v78 = vsel %vm74, 0.0, %v51
    %v79 = vsel %vm75, 0.0, %v50
    %v80 = vsel %vm76, 0.0, %v49
    %v81 = vrot.slane %v38, 1
    %v82 = vrot.slane %v39, 1
    %v83 = vrot.slane %v40, 1
    %v84 = vrot.slane %v41, 1
    %vm85 = vcmp.lt.s32.totalorder %v47, 7
    %v86 = vsel %vm85, %v83, %v84
    %v87 = vsel %vm85, %v82, %v83
    %v88 = vsel %vm85, %v81, %v82
    %v89 = vsel %vm85, %v84, %v81
    %vm90 = vcmp.ge.s32.totalorder %v34, 15
    %vm91 = vcmp.ge.s32.totalorder %v35, 15
    %vm92 = vcmp.ge.s32.totalorder %v36, 15
    %vm93 = vcmp.ge.s32.totalorder %v37, 15
    %v94 = vsel %vm90, 1, 0
    %v95 = vsel %vm91, 1, 0
    %v96 = vsel %vm92, 1, 0
    %v97 = vsel %vm93, 1, 0
    %98 = vset.pattern.permute.xlu0 0
    %99 = vperm.xlu0 %98, %v94
    %v100 = vpop.permute.xlu0 %99
    %101 = vset.pattern.permute.xlu0 0
    %102 = vperm.xlu0 %101, %v95
    %v103 = vpop.permute.xlu0 %102
    %104 = vset.pattern.permute.xlu0 0
    %105 = vperm.xlu0 %104, %v96
    %v106 = vpop.permute.xlu0 %105
    %107 = vset.pattern.permute.xlu0 0
    %108 = vperm.xlu0 %107, %v97
    %v109 = vpop.permute.xlu0 %108
    %vm110 = vcmp.eq.s32.totalorder %v100, 1
    %vm111 = vcmp.eq.s32.totalorder %v103, 1
    %vm112 = vcmp.eq.s32.totalorder %v106, 1
    %vm113 = vcmp.eq.s32.totalorder %v109, 1
    %v114 = vsel %vm110, 0.0, %v88
    %v115 = vsel %vm111, 0.0, %v87
    %v116 = vsel %vm112, 0.0, %v86
    %v117 = vsel %vm113, 0.0, %v89
    %122 = vrot.lane.b32.xlu0 %v38, 32
    %v123 = vpop.permute.xlu0 %122
    %124 = vrot.lane.b32.xlu0 %v39, 32
    %v125 = vpop.permute.xlu0 %124
    %126 = vrot.lane.b32.xlu0 %v40, 32
    %v127 = vpop.permute.xlu0 %126
    %128 = vrot.lane.b32.xlu0 %v41, 32
    %v129 = vpop.permute.xlu0 %128
    %138 = vrot.lane.b32.xlu0 %v114, 64
    %v139 = vpop.permute.xlu0 %138
    %140 = vrot.lane.b32.xlu0 %v115, 64
    %v141 = vpop.permute.xlu0 %140
    %142 = vrot.lane.b32.xlu0 %v116, 64
    %v143 = vpop.permute.xlu0 %142
    %144 = vrot.lane.b32.xlu0 %v117, 64
    %v145 = vpop.permute.xlu0 %144
    %vm150 = vcmask 261120
    %v151 = vsel %vm150, %v77, %v123
    %v152 = vsel %vm150, %v78, %v125
    %v153 = vsel %vm150, %v79, %v127
    %v154 = vsel %vm150, %v80, %v129
    %vm155 = vcmask 523264
    %v156 = vsel %vm155, %v151, %v139
    %v157 = vsel %vm155, %v152, %v141
    %v158 = vsel %vm155, %v153, %v143
    %v159 = vsel %vm155, %v154, %v145
    %v160 = vld [vmem:[%s1] sm:$0xff]
    %v161 = vld [vmem:[%s1 + $0x8] sm:$0xff]
    %v162 = vld [vmem:[%s1 + $0x10] sm:$0xff]
    %v163 = vld [vmem:[%s1 + $0x18] sm:$0xff]
    %v164 = vld [vmem:[%s1 + $0x20] sm:$0xff]
    %v165 = vld [vmem:[%s1 + $0x28] sm:$0xff]
    %v166 = vld [vmem:[%s1 + $0x30] sm:$0xff]
    %v167 = vld [vmem:[%s1 + $0x38] sm:$0xff]
    %v168 = vld [vmem:[%s1 + $0x40] sm:$0xff]
    %v169 = vld [vmem:[%s1 + $0x48] sm:$0xff]
    %v170 = vld [vmem:[%s1 + $0x50] sm:$0xff]
    %v171 = vld [vmem:[%s1 + $0x58] sm:$0xff]
    %v172 = vld [vmem:[%s2] sm:$0x1]
    %v174 = vlaneseq
    %v175 = vshrl.u32 %v174, 7
    %v176 = vsub.s32 0, %v175
    %v177 = vrot.slane %v172, %v176
    %vm179 = vcmask 785408
    %v181 = vsel %vm179, %v156, 0
    %v184 = vsel %vm179, %v157, 0
    %v187 = vsel %vm179, %v158, 0
    %v190 = vsel %vm179, %v159, 0
    %192 = vmatprep.subr.mxu0 0.0
    %193 = vmatpush1.msra.mxu0 0.0
    %194 = vmatprep.subr.mxu0 0.0
    %195 = vmatpush1.msra.mxu0 0.0
    %196 = vmatprep.subr.mxu0 0.0
    %197 = vmatpush1.msra.mxu0 0.0
    %198 = vmatprep.subr.mxu0 0.0
    %199 = vmatpush1.msra.mxu0 0.0
    %200 = vmatprep.subr.mxu0 0.0
    %201 = vmatpush1.msra.mxu0 %v171
    %202 = vmatprep.subr.mxu0 0.0
    %203 = vmatpush1.msra.mxu0 %v170
    %204 = vmatprep.subr.mxu0 0.0
    %205 = vmatpush1.msra.mxu0 %v169
    %206 = vmatprep.subr.mxu0 0.0
    %207 = vmatpush1.msra.mxu0 %v168
    %208 = vmatprep.subr.mxu0 0.0
    %209 = vmatpush1.msra.mxu0 %v167
    %210 = vmatprep.subr.mxu0 0.0
    %211 = vmatpush1.msra.mxu0 %v166
    %212 = vmatprep.subr.mxu0 0.0
    %213 = vmatpush1.msra.mxu0 %v165
    %214 = vmatprep.subr.mxu0 0.0
    %215 = vmatpush1.msra.mxu0 %v164
    %216 = vmatprep.subr.mxu0 0.0
    %217 = vmatpush1.msra.mxu0 %v163
    %218 = vmatprep.subr.mxu0 0.0
    %219 = vmatpush1.msra.mxu0 %v162
    %220 = vmatprep.subr.mxu0 0.0
    %221 = vmatpush1.msra.mxu0 %v161
    %222 = vmatprep.subr.mxu0 0.0
    %223 = vmatpush1.msra.mxu0 %v160
    %224 = vmatprep.subr.mxu0 0.0
    %225 = vmatpush2.msra.mxu0 0.0
    %226 = vmatprep.subr.mxu0 0.0
    %227 = vmatpush2.msra.mxu0 0.0
    %228 = vmatprep.subr.mxu0 0.0
    %229 = vmatpush2.msra.mxu0 0.0
    %230 = vmatprep.subr.mxu0 0.0
    %231 = vmatpush2.msra.mxu0 0.0
    %232 = vmatprep.subr.mxu0 0.0
    %233 = vmatpush2.msra.mxu0 0.0
    %234 = vmatprep.subr.mxu0 0.0
    %235 = vmatpush2.msra.mxu0 0.0
    %236 = vmatprep.subr.mxu0 0.0
    %237 = vmatpush2.msra.mxu0 0.0
    %238 = vmatprep.subr.mxu0 0.0
    %239 = vmatpush2.msra.mxu0 0.0
    %240 = vmatprep.subr.mxu0 0.0
    %241 = vmatpush2.msra.mxu0 0.0
    %242 = vmatprep.subr.mxu0 0.0
    %243 = vmatpush2.msra.mxu0 0.0
    %244 = vmatprep.subr.mxu0 0.0
    %245 = vmatpush2.msra.mxu0 0.0
    %246 = vmatprep.subr.mxu0 0.0
    %247 = vmatpush2.msra.mxu0 0.0
    %248 = vmatprep.subr.mxu0 0.0
    %249 = vmatpush2.msra.mxu0 0.0
    %250 = vmatprep.subr.mxu0 0.0
    %251 = vmatpush2.msra.mxu0 0.0
    %252 = vmatprep.subr.mxu0 0.0
    %253 = vmatpush2.msra.mxu0 0.0
    %254 = vmatprep.subr.mxu0 0.0
    %255 = vmatpush2.msra.mxu0 0.0
    %256 = vmatprep.mubr.f32.mxu0 0.0
    %257 = vmatmul.mubr.f32.gmra.mxu0 %v181
    %v258 = vpop.f32.mrf.mxu0
    %v259 = vadd.f32 %v177, %v258
    %v260 = vpop.f32.mrf.mxu0
    %261 = vmatprep.mubr.f32.mxu0 0.0
    %262 = vmatmul.mubr.f32.gmra.mxu0 %v184
    %v263 = vpop.f32.mrf.mxu0
    %v264 = vadd.f32 %v177, %v263
    %v265 = vpop.f32.mrf.mxu0
    %266 = vmatprep.mubr.f32.mxu0 0.0
    %267 = vmatmul.mubr.f32.gmra.mxu0 %v187
    %v268 = vpop.f32.mrf.mxu0
    %v269 = vadd.f32 %v177, %v268
    %v270 = vpop.f32.mrf.mxu0
    %271 = vmatprep.mubr.f32.mxu0 0.0
    %272 = vmatmul.mubr.f32.gmra.mxu0 %v190
    %v273 = vpop.f32.mrf.mxu0
    %v274 = vadd.f32 %v177, %v273
    %v275 = vpop.f32.mrf.mxu0
    %276 = vdwg.mxu0
    %v277 = vmax.f32 %v259, 0.0
    %v278 = vmax.f32 %v264, 0.0
    %v279 = vmax.f32 %v269, 0.0
    %v280 = vmax.f32 %v274, 0.0
    %v281 = vrot.slane %v277, 7
    %v282 = vrot.slane %v278, 7
    %v283 = vrot.slane %v279, 7
    %v284 = vrot.slane %v280, 7
    %v285 = vsel %vm48, %v283, %v284
    %v286 = vsel %vm48, %v282, %v283
    %v287 = vsel %vm48, %v281, %v282
    %v288 = vsel %vm48, %v284, %v281
    %v289 = vsel %vm73, 0.0, %v288
    %v290 = vsel %vm74, 0.0, %v287
    %v291 = vsel %vm75, 0.0, %v286
    %v292 = vsel %vm76, 0.0, %v285
    %v293 = vrot.slane %v277, 1
    %v294 = vrot.slane %v278, 1
    %v295 = vrot.slane %v279, 1
    %v296 = vrot.slane %v280, 1
    %v297 = vsel %vm85, %v295, %v296
    %v298 = vsel %vm85, %v294, %v295
    %v299 = vsel %vm85, %v293, %v294
    %v300 = vsel %vm85, %v296, %v293
    %v301 = vsel %vm110, 0.0, %v299
    %v302 = vsel %vm111, 0.0, %v298
    %v303 = vsel %vm112, 0.0, %v297
    %v304 = vsel %vm113, 0.0, %v300
    %309 = vrot.lane.b32.xlu0 %v277, 32
    %v310 = vpop.permute.xlu0 %309
    %311 = vrot.lane.b32.xlu0 %v278, 32
    %v312 = vpop.permute.xlu0 %311
    %313 = vrot.lane.b32.xlu0 %v279, 32
    %v314 = vpop.permute.xlu0 %313
    %315 = vrot.lane.b32.xlu0 %v280, 32
    %v316 = vpop.permute.xlu0 %315
    %325 = vrot.lane.b32.xlu0 %v301, 64
    %v326 = vpop.permute.xlu0 %325
    %327 = vrot.lane.b32.xlu0 %v302, 64
    %v328 = vpop.permute.xlu0 %327
    %329 = vrot.lane.b32.xlu0 %v303, 64
    %v330 = vpop.permute.xlu0 %329
    %331 = vrot.lane.b32.xlu0 %v304, 64
    %v332 = vpop.permute.xlu0 %331
    %v337 = vsel %vm150, %v289, %v310
    %v338 = vsel %vm150, %v290, %v312
    %v339 = vsel %vm150, %v291, %v314
    %v340 = vsel %vm150, %v292, %v316
    %v341 = vsel %vm155, %v337, %v326
    %v342 = vsel %vm155, %v338, %v328
    %v343 = vsel %vm155, %v339, %v330
    %v344 = vsel %vm155, %v340, %v332
    %v345 = vld [vmem:[%s3] sm:$0xff]
    %v346 = vld [vmem:[%s3 + $0x8] sm:$0xff]
    %v347 = vld [vmem:[%s3 + $0x10] sm:$0xff]
    %v348 = vld [vmem:[%s3 + $0x18] sm:$0xff]
    %v349 = vld [vmem:[%s3 + $0x20] sm:$0xff]
    %v350 = vld [vmem:[%s3 + $0x28] sm:$0xff]
    %v351 = vld [vmem:[%s3 + $0x30] sm:$0xff]
    %v352 = vld [vmem:[%s3 + $0x38] sm:$0xff]
    %v353 = vld [vmem:[%s3 + $0x40] sm:$0xff]
    %v354 = vld [vmem:[%s3 + $0x48] sm:$0xff]
    %v355 = vld [vmem:[%s3 + $0x50] sm:$0xff]
    %v356 = vld [vmem:[%s3 + $0x58] sm:$0xff]
    %v357 = vld [vmem:[%s4] sm:$0x1]
    %v359 = vlaneseq
    %v360 = vshrl.u32 %v359, 7
    %v361 = vsub.s32 0, %v360
    %v362 = vrot.slane %v357, %v361
    %v365 = vsel %vm179, %v341, 0
    %v368 = vsel %vm179, %v342, 0
    %v371 = vsel %vm179, %v343, 0
    %v374 = vsel %vm179, %v344, 0
    %376 = vmatprep.subr.mxu0 0.0
    %377 = vmatpush1.msra.mxu0 0.0
    %378 = vmatprep.subr.mxu0 0.0
    %379 = vmatpush1.msra.mxu0 0.0
    %380 = vmatprep.subr.mxu0 0.0
    %381 = vmatpush1.msra.mxu0 0.0
    %382 = vmatprep.subr.mxu0 0.0
    %383 = vmatpush1.msra.mxu0 0.0
    %384 = vmatprep.subr.mxu0 0.0
    %385 = vmatpush1.msra.mxu0 %v356
    %386 = vmatprep.subr.mxu0 0.0
    %387 = vmatpush1.msra.mxu0 %v355
    %388 = vmatprep.subr.mxu0 0.0
    %389 = vmatpush1.msra.mxu0 %v354
    %390 = vmatprep.subr.mxu0 0.0
    %391 = vmatpush1.msra.mxu0 %v353
    %392 = vmatprep.subr.mxu0 0.0
    %393 = vmatpush1.msra.mxu0 %v352
    %394 = vmatprep.subr.mxu0 0.0
    %395 = vmatpush1.msra.mxu0 %v351
    %396 = vmatprep.subr.mxu0 0.0
    %397 = vmatpush1.msra.mxu0 %v350
    %398 = vmatprep.subr.mxu0 0.0
    %399 = vmatpush1.msra.mxu0 %v349
    %400 = vmatprep.subr.mxu0 0.0
    %401 = vmatpush1.msra.mxu0 %v348
    %402 = vmatprep.subr.mxu0 0.0
    %403 = vmatpush1.msra.mxu0 %v347
    %404 = vmatprep.subr.mxu0 0.0
    %405 = vmatpush1.msra.mxu0 %v346
    %406 = vmatprep.subr.mxu0 0.0
    %407 = vmatpush1.msra.mxu0 %v345
    %408 = vmatprep.subr.mxu0 0.0
    %409 = vmatpush2.msra.mxu0 0.0
    %410 = vmatprep.subr.mxu0 0.0
    %411 = vmatpush2.msra.mxu0 0.0
    %412 = vmatprep.subr.mxu0 0.0
    %413 = vmatpush2.msra.mxu0 0.0
    %414 = vmatprep.subr.mxu0 0.0
    %415 = vmatpush2.msra.mxu0 0.0
    %416 = vmatprep.subr.mxu0 0.0
    %417 = vmatpush2.msra.mxu0 0.0
    %418 = vmatprep.subr.mxu0 0.0
    %419 = vmatpush2.msra.mxu0 0.0
    %420 = vmatprep.subr.mxu0 0.0
    %421 = vmatpush2.msra.mxu0 0.0
    %422 = vmatprep.subr.mxu0 0.0
    %423 = vmatpush2.msra.mxu0 0.0
    %424 = vmatprep.subr.mxu0 0.0
    %425 = vmatpush2.msra.mxu0 0.0
    %426 = vmatprep.subr.mxu0 0.0
    %427 = vmatpush2.msra.mxu0 0.0
    %428 = vmatprep.subr.mxu0 0.0
    %429 = vmatpush2.msra.mxu0 0.0
    %430 = vmatprep.subr.mxu0 0.0
    %431 = vmatpush2.msra.mxu0 0.0
    %432 = vmatprep.subr.mxu0 0.0
    %433 = vmatpush2.msra.mxu0 0.0
    %434 = vmatprep.subr.mxu0 0.0
    %435 = vmatpush2.msra.mxu0 0.0
    %436 = vmatprep.subr.mxu0 0.0
    %437 = vmatpush2.msra.mxu0 0.0
    %438 = vmatprep.subr.mxu0 0.0
    %439 = vmatpush2.msra.mxu0 0.0
    %440 = vmatprep.mubr.f32.mxu0 0.0
    %441 = vmatmul.mubr.f32.gmra.mxu0 %v365
    %v442 = vpop.f32.mrf.mxu0
    %v443 = vadd.f32 %v362, %v442
    %v444 = vpop.f32.mrf.mxu0
    %445 = vmatprep.mubr.f32.mxu0 0.0
    %446 = vmatmul.mubr.f32.gmra.mxu0 %v368
    %v447 = vpop.f32.mrf.mxu0
    %v448 = vadd.f32 %v362, %v447
    %v449 = vpop.f32.mrf.mxu0
    %450 = vmatprep.mubr.f32.mxu0 0.0
    %451 = vmatmul.mubr.f32.gmra.mxu0 %v371
    %v452 = vpop.f32.mrf.mxu0
    %v453 = vadd.f32 %v362, %v452
    %v454 = vpop.f32.mrf.mxu0
    %455 = vmatprep.mubr.f32.mxu0 0.0
    %456 = vmatmul.mubr.f32.gmra.mxu0 %v374
    %v457 = vpop.f32.mrf.mxu0
    %v458 = vadd.f32 %v362, %v457
    %v459 = vpop.f32.mrf.mxu0
    %460 = vdwg.mxu0
    %v461 = vadd.f32 %v30, %v443
    %v462 = vadd.f32 %v31, %v448
    %v463 = vadd.f32 %v32, %v453
    %v464 = vadd.f32 %v33, %v458
    %v465 = vld [vmem:[%s6] sm:$0xff]
    %v466 = vld [vmem:[%s6 + $0x8] sm:$0xff]
    %v468 = vsel %vm150, %v465, 0
    %v471 = vsel %vm150, %v466, 0
    %473 = vmatprep.subr.mxu0 0.0
    %474 = vmatpush1.msra.mxu0 0.0
    %475 = vmatprep.subr.mxu0 0.0
    %476 = vmatpush1.msra.mxu0 0.0
    %477 = vmatprep.subr.mxu0 0.0
    %478 = vmatpush1.msra.mxu0 0.0
    %479 = vmatprep.subr.mxu0 0.0
    %480 = vmatpush1.msra.mxu0 0.0
    %481 = vmatprep.subr.mxu0 0.0
    %482 = vmatpush1.msra.mxu0 0.0
    %483 = vmatprep.subr.mxu0 0.0
    %484 = vmatpush1.msra.mxu0 0.0
    %485 = vmatprep.subr.mxu0 0.0
    %486 = vmatpush1.msra.mxu0 0.0
    %487 = vmatprep.subr.mxu0 0.0
    %488 = vmatpush1.msra.mxu0 0.0
    %489 = vmatprep.subr.mxu0 0.0
    %490 = vmatpush1.msra.mxu0 0.0
    %491 = vmatprep.subr.mxu0 0.0
    %492 = vmatpush1.msra.mxu0 0.0
    %493 = vmatprep.subr.mxu0 0.0
    %494 = vmatpush1.msra.mxu0 0.0
    %495 = vmatprep.subr.mxu0 0.0
    %496 = vmatpush1.msra.mxu0 0.0
    %497 = vmatprep.subr.mxu0 0.0
    %498 = vmatpush1.msra.mxu0 %v464
    %499 = vmatprep.subr.mxu0 0.0
    %500 = vmatpush1.msra.mxu0 %v463
    %501 = vmatprep.subr.mxu0 0.0
    %502 = vmatpush1.msra.mxu0 %v462
    %503 = vmatprep.subr.mxu0 0.0
    %504 = vmatpush1.msra.mxu0 %v461
    %505 = vmatprep.subr.mxu0 0.0
    %506 = vmatpush2.msra.mxu0 0.0
    %507 = vmatprep.subr.mxu0 0.0
    %508 = vmatpush2.msra.mxu0 0.0
    %509 = vmatprep.subr.mxu0 0.0
    %510 = vmatpush2.msra.mxu0 0.0
    %511 = vmatprep.subr.mxu0 0.0
    %512 = vmatpush2.msra.mxu0 0.0
    %513 = vmatprep.subr.mxu0 0.0
    %514 = vmatpush2.msra.mxu0 0.0
    %515 = vmatprep.subr.mxu0 0.0
    %516 = vmatpush2.msra.mxu0 0.0
    %517 = vmatprep.subr.mxu0 0.0
    %518 = vmatpush2.msra.mxu0 0.0
    %519 = vmatprep.subr.mxu0 0.0
    %520 = vmatpush2.msra.mxu0 0.0
    %521 = vmatprep.subr.mxu0 0.0
    %522 = vmatpush2.msra.mxu0 0.0
    %523 = vmatprep.subr.mxu0 0.0
    %524 = vmatpush2.msra.mxu0 0.0
    %525 = vmatprep.subr.mxu0 0.0
    %526 = vmatpush2.msra.mxu0 0.0
    %527 = vmatprep.subr.mxu0 0.0
    %528 = vmatpush2.msra.mxu0 0.0
    %529 = vmatprep.subr.mxu0 0.0
    %530 = vmatpush2.msra.mxu0 0.0
    %531 = vmatprep.subr.mxu0 0.0
    %532 = vmatpush2.msra.mxu0 0.0
    %533 = vmatprep.subr.mxu0 0.0
    %534 = vmatpush2.msra.mxu0 0.0
    %535 = vmatprep.subr.mxu0 0.0
    %536 = vmatpush2.msra.mxu0 0.0
    %537 = vmatprep.mubr.f32.mxu0 0.0
    %538 = vmatmul.mubr.f32.gmra.mxu0 %v468
    %v539 = vpop.f32.mrf.mxu0
    %v540 = vadd.f32 0.0, %v539
    %v541 = vpop.f32.mrf.mxu0
    %542 = vmatprep.mubr.f32.mxu0 0.0
    %543 = vmatmul.mubr.f32.gmra.mxu0 %v471
    %v544 = vpop.f32.mrf.mxu0
    %v545 = vadd.f32 0.0, %v544
    %v546 = vpop.f32.mrf.mxu0
    %547 = vdwg.mxu0
    %v548 = vld [vmem:[%s7] sm:$0xff]
    %v549 = vld [vmem:[%s7 + $0x8] sm:$0xff]
    %v551 = vsel %vm150, %v548, 0
    %v554 = vsel %vm150, %v549, 0
    %556 = vmatprep.subr.mxu0 0.0
    %557 = vmatpush1.msra.mxu0 0.0
    %558 = vmatprep.subr.mxu0 0.0
    %559 = vmatpush1.msra.mxu0 0.0
    %560 = vmatprep.subr.mxu0 0.0
    %561 = vmatpush1.msra.mxu0 0.0
    %562 = vmatprep.subr.mxu0 0.0
    %563 = vmatpush1.msra.mxu0 0.0
    %564 = vmatprep.subr.mxu0 0.0
    %565 = vmatpush1.msra.mxu0 0.0
    %566 = vmatprep.subr.mxu0 0.0
    %567 = vmatpush1.msra.mxu0 0.0
    %568 = vmatprep.subr.mxu0 0.0
    %569 = vmatpush1.msra.mxu0 0.0
    %570 = vmatprep.subr.mxu0 0.0
    %571 = vmatpush1.msra.mxu0 0.0
    %572 = vmatprep.subr.mxu0 0.0
    %573 = vmatpush1.msra.mxu0 0.0
    %574 = vmatprep.subr.mxu0 0.0
    %575 = vmatpush1.msra.mxu0 0.0
    %576 = vmatprep.subr.mxu0 0.0
    %577 = vmatpush1.msra.mxu0 0.0
    %578 = vmatprep.subr.mxu0 0.0
    %579 = vmatpush1.msra.mxu0 0.0
    %580 = vmatprep.subr.mxu0 0.0
    %581 = vmatpush1.msra.mxu0 %v464
    %582 = vmatprep.subr.mxu0 0.0
    %583 = vmatpush1.msra.mxu0 %v463
    %584 = vmatprep.subr.mxu0 0.0
    %585 = vmatpush1.msra.mxu0 %v462
    %586 = vmatprep.subr.mxu0 0.0
    %587 = vmatpush1.msra.mxu0 %v461
    %588 = vmatprep.subr.mxu0 0.0
    %589 = vmatpush2.msra.mxu0 0.0
    %590 = vmatprep.subr.mxu0 0.0
    %591 = vmatpush2.msra.mxu0 0.0
    %592 = vmatprep.subr.mxu0 0.0
    %593 = vmatpush2.msra.mxu0 0.0
    %594 = vmatprep.subr.mxu0 0.0
    %595 = vmatpush2.msra.mxu0 0.0
    %596 = vmatprep.subr.mxu0 0.0
    %597 = vmatpush2.msra.mxu0 0.0
    %598 = vmatprep.subr.mxu0 0.0
    %599 = vmatpush2.msra.mxu0 0.0
    %600 = vmatprep.subr.mxu0 0.0
    %601 = vmatpush2.msra.mxu0 0.0
    %602 = vmatprep.subr.mxu0 0.0
    %603 = vmatpush2.msra.mxu0 0.0
    %604 = vmatprep.subr.mxu0 0.0
    %605 = vmatpush2.msra.mxu0 0.0
    %606 = vmatprep.subr.mxu0 0.0
    %607 = vmatpush2.msra.mxu0 0.0
    %608 = vmatprep.subr.mxu0 0.0
    %609 = vmatpush2.msra.mxu0 0.0
    %610 = vmatprep.subr.mxu0 0.0
    %611 = vmatpush2.msra.mxu0 0.0
    %612 = vmatprep.subr.mxu0 0.0
    %613 = vmatpush2.msra.mxu0 0.0
    %614 = vmatprep.subr.mxu0 0.0
    %615 = vmatpush2.msra.mxu0 0.0
    %616 = vmatprep.subr.mxu0 0.0
    %617 = vmatpush2.msra.mxu0 0.0
    %618 = vmatprep.subr.mxu0 0.0
    %619 = vmatpush2.msra.mxu0 0.0
    %620 = vmatprep.mubr.f32.mxu0 0.0
    %621 = vmatmul.mubr.f32.gmra.mxu0 %v551
    %v622 = vpop.f32.mrf.mxu0
    %v623 = vadd.f32 0.0, %v622
    %v624 = vpop.f32.mrf.mxu0
    %625 = vmatprep.mubr.f32.mxu0 0.0
    %626 = vmatmul.mubr.f32.gmra.mxu0 %v554
    %v627 = vpop.f32.mrf.mxu0
    %v628 = vadd.f32 0.0, %v627
    %v629 = vpop.f32.mrf.mxu0
    %630 = vdwg.mxu0
    %v631 = vmax.f32 %v540, %v623
    %v632 = vmax.f32 %v545, %v628
    %633 = vst.msk [vmem:[#allocation2] sm:$0xff] %vm150, %v631
    %634 = vst.msk [vmem:[#allocation2 + $0x8] sm:$0xff] %vm150, %v632
    // Predicated region
    $region34: #{tpu_custom_call.1} parent=1 // pred_check
      _
    $region35: #{tpu_custom_call.1} parent=1 // pred_check_branch
      %636 = sbr.rel (0) target = $region37
    $region36: #{tpu_custom_call.1} parent=1 // pred_region
      %s638 = ssub.s32 256, 256
      %639 = vsyncadd [#allocation3], %s638
      %s640 = sshll.u32 [#allocation2], 4
      %s641 = int_to_ptr.vmem [resolvable:$true] %s640
      %646 = dma.vmem_to_hbm [thread:$0]  %s641, 256, %s8, [#allocation3], 128, 128, 8
    $region37: #{tpu_custom_call.1} parent=1 // pred_fallthru
      _
    // Predicated region
    $region38: #{tpu_custom_call.1} parent=1 // pred_check
      _
    $region39: #{tpu_custom_call.1} parent=1 // pred_check_branch
      %648 = sbr.rel (0) target = $region41
    $region40: #{tpu_custom_call.1} parent=1 // pred_region
      %649 = dma.done [#allocation3], 256
    $region41: #{tpu_custom_call.1} parent=1 // pred_fallthru
      _
    %650 = vsyncpa [#allocation3], 1

</llo_original>
